<compile_context>
chip_gen: v5e
topology: v5e:2x2
jax: 0.10.0
libtpu: 0.0.40
codegen_flags: <defaults>
</compile_context>

<pallas_src>
import functools

import jax
import jax.numpy as jnp
from jax.experimental import pallas as pl
from jax.experimental.pallas import tpu as pltpu


NET_ARCH = [256, 256, 128]
H0, H1, H2 = NET_ARCH            # 256, 256, 128 (packing assumes H0 == H1 == 2*H2)
WBIG_HEAD_OFF = 2 * H1 + 2 * H2  # column offset of the block-diagonal head weights


def td3_critic_kernel(s_ref, a_ref, w0s_ref, w0a_ref, w_ref, b_ref, out_ref):
    """Both Q-nets for one batch tile.

    s_ref  : (Bt, Sd)       f32
    a_ref  : (Bt, Ad)       f32
    w0s_ref: (Sd, 2*H0)     bf16   [W1_0 | W2_0] state rows
    w0a_ref: (Ad, 2*H0)     bf16   [W1_0 | W2_0] action rows
    w_ref  : (H0, 770)      bf16   [W1_1 | W2_1 | W1_2 | W2_2 | head_blockdiag]
    b_ref  : (4, 2*H0)      f32    rows: L0 biases, L1 biases, L2 biases, head biases
    out    : (Bt, 2)        f32    column 0 = q1, column 1 = q2
    """
    bf16 = jnp.bfloat16
    f32 = jnp.float32

    s = s_ref[...].astype(bf16)
    a = a_ref[...].astype(bf16)

    # --- fused layer 0: state @ W0_s + action @ W0_a  (== [s|a] @ [W1_0|W2_0]) ---
    h = jnp.dot(s, w0s_ref[...], preferred_element_type=f32)
    h = h + jnp.dot(a, w0a_ref[...], preferred_element_type=f32)
    h = jnp.maximum(h + b_ref[0:1, :], 0.0).astype(bf16)            # (Bt, 2*H0)

    # --- layer 1 (per net: inputs differ, so separate matmuls) ---
    h1 = jnp.dot(h[:, :H0], w_ref[:, 0:H1], preferred_element_type=f32)
    h2 = jnp.dot(h[:, H0:], w_ref[:, H1:2 * H1], preferred_element_type=f32)
    h1 = jnp.maximum(h1 + b_ref[1:2, 0:H1], 0.0).astype(bf16)       # (Bt, H1)
    h2 = jnp.maximum(h2 + b_ref[1:2, H1:2 * H1], 0.0).astype(bf16)

    # --- layer 2 (per net; NOT fused, see header note) ---
    g1 = jnp.dot(h1, w_ref[:, 2 * H1:2 * H1 + H2], preferred_element_type=f32)
    g2 = jnp.dot(h2, w_ref[:, 2 * H1 + H2:2 * H1 + 2 * H2],
                 preferred_element_type=f32)
    g1 = jnp.maximum(g1 + b_ref[2:3, 0:H2], 0.0).astype(bf16)       # (Bt, H2)
    g2 = jnp.maximum(g2 + b_ref[2:3, H2:2 * H2], 0.0).astype(bf16)

    # --- fused heads: block-diagonal (2*H2, 2) weights -> single (Bt, 2) tile ---
    off = WBIG_HEAD_OFF
    q = jnp.dot(g1, w_ref[0:H2, off:off + 2], preferred_element_type=f32)
    q = q + jnp.dot(g2, w_ref[H2:2 * H2, off:off + 2], preferred_element_type=f32)
    out_ref[...] = q + b_ref[3:4, 0:2]


def init_params(key, state_dim, action_dim, net_arch=NET_ARCH):
    """Deterministic init mimicking PyTorch Linear default (U[-1/sqrt(fan_in), +])."""
    dims = [state_dim + action_dim] + list(net_arch) + [1]
    params = []
    for _q in range(2):
        for i in range(len(dims) - 1):
            fan_in, fan_out = dims[i], dims[i + 1]
            key, kw, kb = jax.random.split(key, 3)
            bound = 1.0 / jnp.sqrt(float(fan_in))
            w = jax.random.uniform(kw, (fan_in, fan_out), jnp.float32, -bound, bound)
            b = jax.random.uniform(kb, (1, fan_out), jnp.float32, -bound, bound)
            params.append(w)
            params.append(b)
    return params  # flat list: q1 (w,b)x4 then q2 (w,b)x4


def pack_params(params, state_dim):
    """Pack the 16 per-layer arrays into 4 blobs (bf16 weights, f32 biases).

    NOTE: the kernel's column slicing is not generic; this packing requires
    net_arch == [256, 256, 128] (H0 == H1 == 2*H2).
    """
    assert H0 == H1 and H0 == 2 * H2, "packing assumes net_arch == [256, 256, 128]"
    (w1_0, b1_0, w1_1, b1_1, w1_2, b1_2, w1_o, b1_o,
     w2_0, b2_0, w2_1, b2_1, w2_2, b2_2, w2_o, b2_o) = params
    bf16 = jnp.bfloat16

    # fused first-layer weights, split by input on the host (state rows / action rows)
    w0 = jnp.concatenate([w1_0, w2_0], axis=1)             # (Sd+Ad, 2*H0)
    w0_state = w0[:state_dim].astype(bf16)                  # (Sd, 2*H0)
    w0_action = w0[state_dim:].astype(bf16)                 # (Ad, 2*H0)

    # block-diagonal head weights: (2*H2, 2) with [w1_o | 0] on top, [0 | w2_o] below
    head = jnp.zeros((2 * H2, 2), jnp.float32)
    head = head.at[:H2, 0:1].set(w1_o).at[H2:, 1:2].set(w2_o)

    # remaining weights, concatenated along lanes: (H0, 2*H1 + 2*H2 + 2) = (256, 770)
    w_big = jnp.concatenate([w1_1, w2_1, w1_2, w2_2, head], axis=1).astype(bf16)

    # all biases in one (4, 2*H0) f32 array (rows: L0, L1, L2, heads)
    z2 = jnp.zeros((1, 2 * H0 - 2 * H2), jnp.float32)
    z3 = jnp.zeros((1, 2 * H0 - 2), jnp.float32)
    bias_blob = jnp.concatenate([
        jnp.concatenate([b1_0, b2_0], axis=1),
        jnp.concatenate([b1_1, b2_1], axis=1),
        jnp.concatenate([b1_2, b2_2, z2], axis=1),
        jnp.concatenate([b1_o, b2_o, z3], axis=1),
    ], axis=0)

    return w0_state, w0_action, w_big, bias_blob


def _round_up(x, m):
    return (x + m - 1) // m * m


@functools.partial(jax.jit, static_argnames=("block_batch",))
def td3_critic_forward(state, action, packed, block_batch=1024):
    """Returns (q1, q2), each (batch, 1) f32.

    block_batch: batch-tile size. Default 1024 fits comfortably in every
    chip's scoped VMEM; keep <= ~2048 on v5e/v7x (or raise vmem_limit_bytes).
    """
    w0_state, w0_action, w_big, bias_blob = packed
    batch, sd = state.shape
    ad = action.shape[1]

    # Batch tile: multiple of 8 sublanes, never larger than (padded) batch.
    bb = min(block_batch, _round_up(batch, 8))
    padded = _round_up(batch, bb)
    if padded != batch:
        pad = padded - batch
        state = jnp.pad(state, ((0, pad), (0, 0)))
        action = jnp.pad(action, ((0, pad), (0, 0)))

    q12 = pl.pallas_call(
        td3_critic_kernel,
        out_shape=jax.ShapeDtypeStruct((padded, 2), jnp.float32),
        grid=(padded // bb,),
        in_specs=[
            # batch-tiled activations
            pl.BlockSpec((bb, sd), lambda i: (i, 0)),
            pl.BlockSpec((bb, ad), lambda i: (i, 0)),
            # weight/bias blobs: constant index_map -> VMEM-resident, no re-DMA
            pl.BlockSpec(w0_state.shape, lambda i: (0, 0)),
            pl.BlockSpec(w0_action.shape, lambda i: (0, 0)),
            pl.BlockSpec(w_big.shape, lambda i: (0, 0)),
            pl.BlockSpec(bias_blob.shape, lambda i: (0, 0)),
        ],
        out_specs=pl.BlockSpec((bb, 2), lambda i: (i, 0)),
        compiler_params=pltpu.CompilerParams(
            dimension_semantics=("parallel",),       # v7x: shard batch over 2 TCs
            vmem_limit_bytes=32 * 1024 * 1024,       # raises v5e's 16 MiB default
        ),
    )(state, action, w0_state, w0_action, w_big, bias_blob)

    return q12[:batch, 0:1], q12[:batch, 1:2]


def td3_critic_reference(state, action, params):
    """Pure-JAX reference with the same bf16-weight / bf16-activation rounding."""
    bf16 = jnp.bfloat16
    sa = jnp.concatenate([state, action], axis=1)
    pairs = [(params[i], params[i + 1]) for i in range(0, len(params), 2)]

    def mlp(x, layers):
        for w, b in layers[:-1]:
            y = jnp.dot(x.astype(bf16), w.astype(bf16),
                        preferred_element_type=jnp.float32) + b
            x = jnp.maximum(y, 0.0)
        w, b = layers[-1]
        return jnp.dot(x.astype(bf16), w.astype(bf16),
                       preferred_element_type=jnp.float32) + b

    q1 = mlp(sa, pairs[:4])
    q2 = mlp(sa, pairs[4:])
    return q1, q2


if __name__ == "__main__":
    key = jax.random.PRNGKey(0)
    k_state, k_action, k_params, k_s2, k_a2 = jax.random.split(key, 5)

    state_dim = 16
    action_dim = 8
    params = init_params(k_params, state_dim, action_dim)
    packed = pack_params(params, state_dim)

    # --- small batch (single grid step) ---
    batch = 8
    state = jax.random.normal(k_state, (batch, state_dim), jnp.float32)
    action = jax.random.normal(k_action, (batch, action_dim), jnp.float32)

    q1, q2 = td3_critic_forward(state, action, packed)
    q1 = jax.block_until_ready(q1)
    q2 = jax.block_until_ready(q2)

    q1_ref, q2_ref = td3_critic_reference(state, action, params)
    assert q1.shape == (batch, 1) and q2.shape == (batch, 1)
    assert jnp.allclose(q1, q1_ref, atol=2e-3, rtol=2e-3)
    assert jnp.allclose(q2, q2_ref, atol=2e-3, rtol=2e-3)

    # --- multi-step batch grid (exercises resident weights + padding path) ---
    batch2 = 300
    state2 = jax.random.normal(k_s2, (batch2, state_dim), jnp.float32)
    action2 = jax.random.normal(k_a2, (batch2, action_dim), jnp.float32)

    q1b, q2b = td3_critic_forward(state2, action2, packed, block_batch=128)
    q1b = jax.block_until_ready(q1b)
    q2b = jax.block_until_ready(q2b)

    q1b_ref, q2b_ref = td3_critic_reference(state2, action2, params)
    assert q1b.shape == (batch2, 1) and q2b.shape == (batch2, 1)
    assert jnp.allclose(q1b, q1b_ref, atol=2e-3, rtol=2e-3)
    assert jnp.allclose(q2b, q2b_ref, atol=2e-3, rtol=2e-3)

    print("KERNEL_OK")
</pallas_src>

<mosaic_0001>
module attributes {stable_mosaic.version = 11 : i64} {
  func.func @td3_critic_kernel(%arg0: i32, %arg1: memref<8x16xf32, #tpu.memory_space<vmem>>, %arg2: memref<8x8xf32, #tpu.memory_space<vmem>>, %arg3: memref<16x512xbf16, #tpu.memory_space<vmem>>, %arg4: memref<8x512xbf16, #tpu.memory_space<vmem>>, %arg5: memref<256x770xbf16, #tpu.memory_space<vmem>>, %arg6: memref<4x512xf32, #tpu.memory_space<vmem>>, %arg7: memref<8x2xf32, #tpu.memory_space<vmem>>) attributes {dimension_semantics = [#tpu.dimension_semantics<parallel>], iteration_bounds = array<i64: 1>, scalar_prefetch = 0 : i64, scratch_operands = 0 : i64, tpu.core_type = #tpu.core_type<tc>, window_params = [{transform_indices = @transform_0, window_bounds = array<i64: 8, 16>}, {transform_indices = @transform_1, window_bounds = array<i64: 8, 8>}, {pipeline_mode = #tpu.pipeline_mode<synchronous>, transform_indices = @transform_2, window_bounds = array<i64: 16, 512>}, {pipeline_mode = #tpu.pipeline_mode<synchronous>, transform_indices = @transform_3, window_bounds = array<i64: 8, 512>}, {pipeline_mode = #tpu.pipeline_mode<synchronous>, transform_indices = @transform_4, window_bounds = array<i64: 256, 770>}, {pipeline_mode = #tpu.pipeline_mode<synchronous>, transform_indices = @transform_5, window_bounds = array<i64: 4, 512>}, {transform_indices = @transform_6, window_bounds = array<i64: 8, 2>}]} {
    %c0 = arith.constant 0 : index
    %c0_0 = arith.constant 0 : index
    %0 = vector.load %arg1[%c0, %c0_0] : memref<8x16xf32, #tpu.memory_space<vmem>>, vector<8x16xf32>
    %1 = arith.truncf %0 : vector<8x16xf32> to vector<8x16xbf16>
    %c0_1 = arith.constant 0 : index
    %c0_2 = arith.constant 0 : index
    %2 = vector.load %arg2[%c0_1, %c0_2] : memref<8x8xf32, #tpu.memory_space<vmem>>, vector<8x8xf32>
    %3 = arith.truncf %2 : vector<8x8xf32> to vector<8x8xbf16>
    %c0_3 = arith.constant 0 : index
    %c0_4 = arith.constant 0 : index
    %4 = vector.load %arg3[%c0_3, %c0_4] : memref<16x512xbf16, #tpu.memory_space<vmem>>, vector<16x512xbf16>
    %cst = arith.constant dense<0.000000e+00> : vector<8x512xf32>
    %5 = tpu.matmul %1, %4, %cst {dimension_numbers = #tpu.dot_dimension_numbers<[1], [0], [0], [1], [0, 0, 1, 1], [], []>} : vector<8x16xbf16>, vector<16x512xbf16>, vector<8x512xf32> -> vector<8x512xf32>
    %c0_5 = arith.constant 0 : index
    %c0_6 = arith.constant 0 : index
    %6 = vector.load %arg4[%c0_5, %c0_6] : memref<8x512xbf16, #tpu.memory_space<vmem>>, vector<8x512xbf16>
    %cst_7 = arith.constant dense<0.000000e+00> : vector<8x512xf32>
    %7 = tpu.matmul %3, %6, %cst_7 {dimension_numbers = #tpu.dot_dimension_numbers<[1], [0], [0], [1], [0, 0, 1, 1], [], []>} : vector<8x8xbf16>, vector<8x512xbf16>, vector<8x512xf32> -> vector<8x512xf32>
    %8 = arith.addf %5, %7 : vector<8x512xf32>
    %c0_8 = arith.constant 0 : index
    %c0_9 = arith.constant 0 : index
    %9 = vector.load %arg6[%c0_8, %c0_9] : memref<4x512xf32, #tpu.memory_space<vmem>>, vector<1x512xf32>
    %10 = vector.broadcast %9 : vector<1x512xf32> to vector<8x512xf32>
    %11 = arith.addf %8, %10 : vector<8x512xf32>
    %cst_10 = arith.constant 0.000000e+00 : f32
    %12 = vector.broadcast %cst_10 : f32 to vector<8x512xf32>
    %13 = arith.maximumf %11, %12 : vector<8x512xf32>
    %14 = arith.truncf %13 : vector<8x512xf32> to vector<8x512xbf16>
    %15 = vector.extract_strided_slice %14 {offsets = [0, 0], sizes = [8, 256], strides = [1, 1]} : vector<8x512xbf16> to vector<8x256xbf16>
    %c0_11 = arith.constant 0 : index
    %c0_12 = arith.constant 0 : index
    %16 = vector.load %arg5[%c0_11, %c0_12] : memref<256x770xbf16, #tpu.memory_space<vmem>>, vector<256x256xbf16>
    %cst_13 = arith.constant dense<0.000000e+00> : vector<8x256xf32>
    %17 = tpu.matmul %15, %16, %cst_13 {dimension_numbers = #tpu.dot_dimension_numbers<[1], [0], [0], [1], [0, 0, 1, 1], [], []>} : vector<8x256xbf16>, vector<256x256xbf16>, vector<8x256xf32> -> vector<8x256xf32>
    %18 = vector.extract_strided_slice %14 {offsets = [0, 256], sizes = [8, 256], strides = [1, 1]} : vector<8x512xbf16> to vector<8x256xbf16>
    %c0_14 = arith.constant 0 : index
    %c256 = arith.constant 256 : index
    %19 = vector.load %arg5[%c0_14, %c256] : memref<256x770xbf16, #tpu.memory_space<vmem>>, vector<256x256xbf16>
    %cst_15 = arith.constant dense<0.000000e+00> : vector<8x256xf32>
    %20 = tpu.matmul %18, %19, %cst_15 {dimension_numbers = #tpu.dot_dimension_numbers<[1], [0], [0], [1], [0, 0, 1, 1], [], []>} : vector<8x256xbf16>, vector<256x256xbf16>, vector<8x256xf32> -> vector<8x256xf32>
    %c1 = arith.constant 1 : index
    %c0_16 = arith.constant 0 : index
    %21 = vector.load %arg6[%c1, %c0_16] : memref<4x512xf32, #tpu.memory_space<vmem>>, vector<1x256xf32>
    %22 = vector.broadcast %21 : vector<1x256xf32> to vector<8x256xf32>
    %23 = arith.addf %17, %22 : vector<8x256xf32>
    %cst_17 = arith.constant 0.000000e+00 : f32
    %24 = vector.broadcast %cst_17 : f32 to vector<8x256xf32>
    %25 = arith.maximumf %23, %24 : vector<8x256xf32>
    %26 = arith.truncf %25 : vector<8x256xf32> to vector<8x256xbf16>
    %c1_18 = arith.constant 1 : index
    %c256_19 = arith.constant 256 : index
    %27 = vector.load %arg6[%c1_18, %c256_19] : memref<4x512xf32, #tpu.memory_space<vmem>>, vector<1x256xf32>
    %28 = vector.broadcast %27 : vector<1x256xf32> to vector<8x256xf32>
    %29 = arith.addf %20, %28 : vector<8x256xf32>
    %cst_20 = arith.constant 0.000000e+00 : f32
    %30 = vector.broadcast %cst_20 : f32 to vector<8x256xf32>
    %31 = arith.maximumf %29, %30 : vector<8x256xf32>
    %32 = arith.truncf %31 : vector<8x256xf32> to vector<8x256xbf16>
    %c0_21 = arith.constant 0 : index
    %c512 = arith.constant 512 : index
    %33 = vector.load %arg5[%c0_21, %c512] : memref<256x770xbf16, #tpu.memory_space<vmem>>, vector<256x128xbf16>
    %cst_22 = arith.constant dense<0.000000e+00> : vector<8x128xf32>
    %34 = tpu.matmul %26, %33, %cst_22 {dimension_numbers = #tpu.dot_dimension_numbers<[1], [0], [0], [1], [0, 0, 1, 1], [], []>} : vector<8x256xbf16>, vector<256x128xbf16>, vector<8x128xf32> -> vector<8x128xf32>
    %c0_23 = arith.constant 0 : index
    %c640 = arith.constant 640 : index
    %35 = vector.load %arg5[%c0_23, %c640] : memref<256x770xbf16, #tpu.memory_space<vmem>>, vector<256x128xbf16>
    %cst_24 = arith.constant dense<0.000000e+00> : vector<8x128xf32>
    %36 = tpu.matmul %32, %35, %cst_24 {dimension_numbers = #tpu.dot_dimension_numbers<[1], [0], [0], [1], [0, 0, 1, 1], [], []>} : vector<8x256xbf16>, vector<256x128xbf16>, vector<8x128xf32> -> vector<8x128xf32>
    %c2 = arith.constant 2 : index
    %c0_25 = arith.constant 0 : index
    %37 = vector.load %arg6[%c2, %c0_25] : memref<4x512xf32, #tpu.memory_space<vmem>>, vector<1x128xf32>
    %38 = vector.broadcast %37 : vector<1x128xf32> to vector<8x128xf32>
    %39 = arith.addf %34, %38 : vector<8x128xf32>
    %cst_26 = arith.constant 0.000000e+00 : f32
    %40 = vector.broadcast %cst_26 : f32 to vector<8x128xf32>
    %41 = arith.maximumf %39, %40 : vector<8x128xf32>
    %42 = arith.truncf %41 : vector<8x128xf32> to vector<8x128xbf16>
    %c2_27 = arith.constant 2 : index
    %c128 = arith.constant 128 : index
    %43 = vector.load %arg6[%c2_27, %c128] : memref<4x512xf32, #tpu.memory_space<vmem>>, vector<1x128xf32>
    %44 = vector.broadcast %43 : vector<1x128xf32> to vector<8x128xf32>
    %45 = arith.addf %36, %44 : vector<8x128xf32>
    %cst_28 = arith.constant 0.000000e+00 : f32
    %46 = vector.broadcast %cst_28 : f32 to vector<8x128xf32>
    %47 = arith.maximumf %45, %46 : vector<8x128xf32>
    %48 = arith.truncf %47 : vector<8x128xf32> to vector<8x128xbf16>
    %c0_29 = arith.constant 0 : index
    %c768 = arith.constant 768 : index
    %49 = vector.load %arg5[%c0_29, %c768] : memref<256x770xbf16, #tpu.memory_space<vmem>>, vector<128x2xbf16>
    %cst_30 = arith.constant dense<0.000000e+00> : vector<8x2xf32>
    %50 = tpu.matmul %42, %49, %cst_30 {dimension_numbers = #tpu.dot_dimension_numbers<[1], [0], [0], [1], [0, 0, 1, 1], [], []>} : vector<8x128xbf16>, vector<128x2xbf16>, vector<8x2xf32> -> vector<8x2xf32>
    %c128_31 = arith.constant 128 : index
    %c768_32 = arith.constant 768 : index
    %51 = vector.load %arg5[%c128_31, %c768_32] : memref<256x770xbf16, #tpu.memory_space<vmem>>, vector<128x2xbf16>
    %cst_33 = arith.constant dense<0.000000e+00> : vector<8x2xf32>
    %52 = tpu.matmul %48, %51, %cst_33 {dimension_numbers = #tpu.dot_dimension_numbers<[1], [0], [0], [1], [0, 0, 1, 1], [], []>} : vector<8x128xbf16>, vector<128x2xbf16>, vector<8x2xf32> -> vector<8x2xf32>
    %53 = arith.addf %50, %52 : vector<8x2xf32>
    %c3 = arith.constant 3 : index
    %c0_34 = arith.constant 0 : index
    %54 = vector.load %arg6[%c3, %c0_34] : memref<4x512xf32, #tpu.memory_space<vmem>>, vector<1x2xf32>
    %55 = vector.broadcast %54 : vector<1x2xf32> to vector<8x2xf32>
    %56 = arith.addf %53, %55 : vector<8x2xf32>
    %c0_35 = arith.constant 0 : index
    %c0_36 = arith.constant 0 : index
    %57 = vector.load %arg7[%c0_35, %c0_36] : memref<8x2xf32, #tpu.memory_space<vmem>>, vector<8x2xf32>
    tpu.vector_store %arg7[%c0_35, %c0_36], %56 {strides = array<i32>} : memref<8x2xf32, #tpu.memory_space<vmem>>, vector<8x2xf32>,
    return
  }
  func.func @transform_0(%arg0: i32) -> (i32, i32) {
    %c0_i32 = arith.constant 0 : i32
    %c0_i32_0 = arith.constant 0 : i32
    return %arg0, %c0_i32 : i32, i32
  }
  func.func @transform_1(%arg0: i32) -> (i32, i32) {
    %c0_i32 = arith.constant 0 : i32
    %c0_i32_0 = arith.constant 0 : i32
    return %arg0, %c0_i32 : i32, i32
  }
  func.func @transform_2(%arg0: i32) -> (i32, i32) {
    %c0_i32 = arith.constant 0 : i32
    %c0_i32_0 = arith.constant 0 : i32
    %c0_i32_1 = arith.constant 0 : i32
    return %c0_i32, %c0_i32_0 : i32, i32
  }
  func.func @transform_3(%arg0: i32) -> (i32, i32) {
    %c0_i32 = arith.constant 0 : i32
    %c0_i32_0 = arith.constant 0 : i32
    %c0_i32_1 = arith.constant 0 : i32
    return %c0_i32, %c0_i32_0 : i32, i32
  }
  func.func @transform_4(%arg0: i32) -> (i32, i32) {
    %c0_i32 = arith.constant 0 : i32
    %c0_i32_0 = arith.constant 0 : i32
    %c0_i32_1 = arith.constant 0 : i32
    return %c0_i32, %c0_i32_0 : i32, i32
  }
  func.func @transform_5(%arg0: i32) -> (i32, i32) {
    %c0_i32 = arith.constant 0 : i32
    %c0_i32_0 = arith.constant 0 : i32
    %c0_i32_1 = arith.constant 0 : i32
    return %c0_i32, %c0_i32_0 : i32, i32
  }
  func.func @transform_6(%arg0: i32) -> (i32, i32) {
    %c0_i32 = arith.constant 0 : i32
    %c0_i32_0 = arith.constant 0 : i32
    return %arg0, %c0_i32 : i32, i32
  }
}

</mosaic_0001>

<llo_original>
// kernel: td3_critic_forward.1
$region0: #{td3_critic_forward.1}
  #allocation0 [shape = 'u32[]', space=smem, size = 0x4, offset = 0x4, fixed_abs, tag = 'smem constant byte address 0x4 - core index']
  #allocation1 [shape = 'u32[72,128]{1,0:T(1,128)}', space=vmem, size = 0x9000, scoped, tag = 'internal scratch']
  %s0 = inlined_call_operand.vmem [shape: f32[8,16], index: 0, kind: input, shape index: {}]
  %s1 = inlined_call_operand.vmem [shape: f32[8,8], index: 1, kind: input, shape index: {}]
  %s2 = inlined_call_operand.vmem [shape: bf16[16,512], index: 2, kind: input, shape index: {}]
  %s3 = inlined_call_operand.vmem [shape: bf16[8,512], index: 3, kind: input, shape index: {}]
  %s4 = inlined_call_operand.vmem [shape: bf16[256,770], index: 4, kind: input, shape index: {}]
  %s5 = inlined_call_operand.vmem [shape: f32[4,512], index: 5, kind: input, shape index: {}]
  %s6 = inlined_call_operand.vmem [shape: f32[8,2], index: 6, kind: output, shape index: {}]
  %s7 = sld [smem:[#allocation0]]
  $region34: #{td3_critic_forward.1} parent=0
    _
  %s9 = ssub.s32 1, %s7
  %s10 = scalar_select 0, %s9, %s7
  // Predicated region
  $region2: #{td3_critic_forward.1} parent=0 // pred_check
    _
  $region3: #{td3_critic_forward.1} parent=0 // pred_check_branch
    %12 = sbr.rel (0) target = $region5
  $region4: #{td3_critic_forward.1} parent=0 // pred_region
    _
  $region5: #{td3_critic_forward.1} parent=0 // pred_fallthru
    _
  // Predicated region
  $region6: #{td3_critic_forward.1} parent=0 // pred_check
    _
  $region7: #{td3_critic_forward.1} parent=0 // pred_check_branch
    %14 = sbr.rel (0) target = $region9
  $region8: #{td3_critic_forward.1} parent=0 // pred_region
    _
  $region9: #{td3_critic_forward.1} parent=0 // pred_fallthru
    _
  // Predicated region
  $region10: #{td3_critic_forward.1} parent=0 // pred_check
    _
  $region11: #{td3_critic_forward.1} parent=0 // pred_check_branch
    %16 = sbr.rel (0) target = $region13
  $region12: #{td3_critic_forward.1} parent=0 // pred_region
    _
  $region13: #{td3_critic_forward.1} parent=0 // pred_fallthru
    _
  // Predicated region
  $region14: #{td3_critic_forward.1} parent=0 // pred_check
    _
  $region15: #{td3_critic_forward.1} parent=0 // pred_check_branch
    %18 = sbr.rel (0) target = $region17
  $region16: #{td3_critic_forward.1} parent=0 // pred_region
    _
  $region17: #{td3_critic_forward.1} parent=0 // pred_fallthru
    _
  // Predicated region
  $region18: #{td3_critic_forward.1} parent=0 // pred_check
    _
  $region19: #{td3_critic_forward.1} parent=0 // pred_check_branch
    %20 = sbr.rel (0) target = $region21
  $region20: #{td3_critic_forward.1} parent=0 // pred_region
    _
  $region21: #{td3_critic_forward.1} parent=0 // pred_fallthru
    _
  // Predicated region
  $region22: #{td3_critic_forward.1} parent=0 // pred_check
    _
  $region23: #{td3_critic_forward.1} parent=0 // pred_check_branch
    %22 = sbr.rel (0) target = $region25
  $region24: #{td3_critic_forward.1} parent=0 // pred_region
    _
  $region25: #{td3_critic_forward.1} parent=0 // pred_fallthru
    _
  %v24 = vld [vmem:[%s0] sm:$0xff]
  %v25 = vpack.c.bf16 %v24, %v24
  %v26 = vld [vmem:[%s1] sm:$0xff]
  %v27 = vpack.c.bf16 %v26, %v26
  %v28 = vld [vmem:[%s2] sm:$0xff]
  %v29 = vld [vmem:[%s2 + $0x8] sm:$0xff]
  %v30 = vld [vmem:[%s2 + $0x10] sm:$0xff]
  %v31 = vld [vmem:[%s2 + $0x18] sm:$0xff]
  %v32 = vld [vmem:[%s3] sm:$0xff]
  %v33 = vld [vmem:[%s3 + $0x8] sm:$0xff]
  %v36 = vunpack.c.l.b16 %v32
  %v37 = vunpack.c.h.b16 %v32
  %v38 = vunpack.c.l.b16 %v33
  %v39 = vunpack.c.h.b16 %v33
  %v40 = vpack.c.b16 %v36, %v36
  %v41 = vpack.c.b16 %v37, %v37
  %v42 = vpack.c.b16 %v38, %v38
  %v43 = vpack.c.b16 %v39, %v39
  %vm44 = vcmask 64512
  %v46 = vsel %vm44, %v27, 0
  %vm48 = vcmask 1043456
  %v50 = vsel %vm48, %v40, 0
  %v53 = vsel %vm48, %v41, 0
  %v56 = vsel %vm48, %v42, 0
  %v59 = vsel %vm48, %v43, 0
  %61 = vmatpush.bf16.msra.mxu0 0
  %62 = vmatpush.bf16.msra.mxu0 0
  %63 = vmatpush.bf16.msra.mxu0 0
  %64 = vmatpush.bf16.msra.mxu0 0
  %65 = vmatpush.bf16.msra.mxu0 0
  %66 = vmatpush.bf16.msra.mxu0 0
  %67 = vmatpush.bf16.msra.mxu0 0
  %68 = vmatpush.bf16.msra.mxu0 %v50
  %69 = vmatmul.bf16.gmra.mxu0 %v46
  %v70 = vpop.f32.mrf.mxu0
  %v71 = vadd.f32 0.0, %v70
  %v72 = vpop.f32.mrf.mxu0
  %73 = vdwg.mxu0
  %74 = vmatpush.bf16.msra.mxu0 0
  %75 = vmatpush.bf16.msra.mxu0 0
  %76 = vmatpush.bf16.msra.mxu0 0
  %77 = vmatpush.bf16.msra.mxu0 0
  %78 = vmatpush.bf16.msra.mxu0 0
  %79 = vmatpush.bf16.msra.mxu0 0
  %80 = vmatpush.bf16.msra.mxu0 0
  %81 = vmatpush.bf16.msra.mxu0 %v53
  %82 = vmatmul.bf16.gmra.mxu0 %v46
  %v83 = vpop.f32.mrf.mxu0
  %v84 = vadd.f32 0.0, %v83
  %v85 = vpop.f32.mrf.mxu0
  %86 = vdwg.mxu0
  %87 = vmatpush.bf16.msra.mxu0 0
  %88 = vmatpush.bf16.msra.mxu0 0
  %89 = vmatpush.bf16.msra.mxu0 0
  %90 = vmatpush.bf16.msra.mxu0 0
  %91 = vmatpush.bf16.msra.mxu0 0
  %92 = vmatpush.bf16.msra.mxu0 0
  %93 = vmatpush.bf16.msra.mxu0 0
  %94 = vmatpush.bf16.msra.mxu0 %v56
  %95 = vmatmul.bf16.gmra.mxu0 %v46
  %v96 = vpop.f32.mrf.mxu0
  %v97 = vadd.f32 0.0, %v96
  %v98 = vpop.f32.mrf.mxu0
  %99 = vdwg.mxu0
  %100 = vmatpush.bf16.msra.mxu0 0
  %101 = vmatpush.bf16.msra.mxu0 0
  %102 = vmatpush.bf16.msra.mxu0 0
  %103 = vmatpush.bf16.msra.mxu0 0
  %104 = vmatpush.bf16.msra.mxu0 0
  %105 = vmatpush.bf16.msra.mxu0 0
  %106 = vmatpush.bf16.msra.mxu0 0
  %107 = vmatpush.bf16.msra.mxu0 %v59
  %108 = vmatmul.bf16.gmra.mxu0 %v46
  %v109 = vpop.f32.mrf.mxu0
  %v110 = vadd.f32 0.0, %v109
  %v111 = vpop.f32.mrf.mxu0
  %112 = vdwg.mxu0
  %v117 = vunpack.c.l.b16 %v28
  %v118 = vunpack.c.h.b16 %v28
  %v119 = vunpack.c.l.b16 %v29
  %v120 = vunpack.c.h.b16 %v29
  %v121 = vunpack.c.l.b16 %v30
  %v122 = vunpack.c.h.b16 %v30
  %v123 = vunpack.c.l.b16 %v31
  %v124 = vunpack.c.h.b16 %v31
  %v125 = vpack.c.b16 %v121, %v117
  %v126 = vpack.c.b16 %v122, %v118
  %v127 = vpack.c.b16 %v123, %v119
  %v128 = vpack.c.b16 %v124, %v120
  %vm133 = vcmask 130048
  %v135 = vsel %vm133, %v25, 0
  %137 = vmatpush.bf16.msra.mxu0 0
  %138 = vmatpush.bf16.msra.mxu0 0
  %139 = vmatpush.bf16.msra.mxu0 0
  %140 = vmatpush.bf16.msra.mxu0 0
  %141 = vmatpush.bf16.msra.mxu0 0
  %142 = vmatpush.bf16.msra.mxu0 0
  %143 = vmatpush.bf16.msra.mxu0 0
  %144 = vmatpush.bf16.msra.mxu0 %v125
  %145 = vmatmul.bf16.gmra.mxu0 %v135
  %v146 = vpop.f32.mrf.mxu0
  %v147 = vadd.f32 %v71, %v146
  %v148 = vpop.f32.mrf.mxu0
  %149 = vdwg.mxu0
  %150 = vmatpush.bf16.msra.mxu0 0
  %151 = vmatpush.bf16.msra.mxu0 0
  %152 = vmatpush.bf16.msra.mxu0 0
  %153 = vmatpush.bf16.msra.mxu0 0
  %154 = vmatpush.bf16.msra.mxu0 0
  %155 = vmatpush.bf16.msra.mxu0 0
  %156 = vmatpush.bf16.msra.mxu0 0
  %157 = vmatpush.bf16.msra.mxu0 %v126
  %158 = vmatmul.bf16.gmra.mxu0 %v135
  %v159 = vpop.f32.mrf.mxu0
  %v160 = vadd.f32 %v84, %v159
  %v161 = vpop.f32.mrf.mxu0
  %162 = vdwg.mxu0
  %163 = vmatpush.bf16.msra.mxu0 0
  %164 = vmatpush.bf16.msra.mxu0 0
  %165 = vmatpush.bf16.msra.mxu0 0
  %166 = vmatpush.bf16.msra.mxu0 0
  %167 = vmatpush.bf16.msra.mxu0 0
  %168 = vmatpush.bf16.msra.mxu0 0
  %169 = vmatpush.bf16.msra.mxu0 0
  %170 = vmatpush.bf16.msra.mxu0 %v127
  %171 = vmatmul.bf16.gmra.mxu0 %v135
  %v172 = vpop.f32.mrf.mxu0
  %v173 = vadd.f32 %v97, %v172
  %v174 = vpop.f32.mrf.mxu0
  %175 = vdwg.mxu0
  %176 = vmatpush.bf16.msra.mxu0 0
  %177 = vmatpush.bf16.msra.mxu0 0
  %178 = vmatpush.bf16.msra.mxu0 0
  %179 = vmatpush.bf16.msra.mxu0 0
  %180 = vmatpush.bf16.msra.mxu0 0
  %181 = vmatpush.bf16.msra.mxu0 0
  %182 = vmatpush.bf16.msra.mxu0 0
  %183 = vmatpush.bf16.msra.mxu0 %v128
  %184 = vmatmul.bf16.gmra.mxu0 %v135
  %v185 = vpop.f32.mrf.mxu0
  %v186 = vadd.f32 %v110, %v185
  %v187 = vpop.f32.mrf.mxu0
  %188 = vdwg.mxu0
  %v189 = vld [vmem:[%s5] ss:$4 sm:$0xf]
  %v191 = vperm.slane %v189, 0
  %v192 = vperm.slane %v189, 1
  %v193 = vperm.slane %v189, 2
  %v194 = vperm.slane %v189, 3
  %v199 = vadd.f32 %v147, %v191
  %v200 = vadd.f32 %v160, %v192
  %v201 = vadd.f32 %v173, %v193
  %v202 = vadd.f32 %v186, %v194
  %v203 = vmax.f32 %v199, 0.0
  %v204 = vmax.f32 %v200, 0.0
  %v205 = vmax.f32 %v201, 0.0
  %v206 = vmax.f32 %v202, 0.0
  %v207 = vpack.c.bf16 %v204, %v203
  %v208 = vpack.c.bf16 %v206, %v205
  %v209 = vld [vmem:[%s4] sm:$0xff]
  %v210 = vld [vmem:[%s4 + $0x1c] sm:$0xff]
  %v211 = vld [vmem:[%s4 + $0x38] sm:$0xff]
  %v212 = vld [vmem:[%s4 + $0x54] sm:$0xff]
  %v213 = vld [vmem:[%s4 + $0x70] sm:$0xff]
  %v214 = vld [vmem:[%s4 + $0x8c] sm:$0xff]
  %v215 = vld [vmem:[%s4 + $0xa8] sm:$0xff]
  %v216 = vld [vmem:[%s4 + $0xc4] sm:$0xff]
  %v217 = vld [vmem:[%s4 + $0xe0] sm:$0xff]
  %v218 = vld [vmem:[%s4 + $0xfc] sm:$0xff]
  %v219 = vld [vmem:[%s4 + $0x118] sm:$0xff]
  %v220 = vld [vmem:[%s4 + $0x134] sm:$0xff]
  %v221 = vld [vmem:[%s4 + $0x150] sm:$0xff]
  %v222 = vld [vmem:[%s4 + $0x16c] sm:$0xff]
  %v223 = vld [vmem:[%s4 + $0x188] sm:$0xff]
  %v224 = vld [vmem:[%s4 + $0x1a4] sm:$0xff]
  %v225 = vld [vmem:[%s4 + $0x1c0] sm:$0xff]
  %v226 = vld [vmem:[%s4 + $0x1dc] sm:$0xff]
  %v227 = vld [vmem:[%s4 + $0x1f8] sm:$0xff]
  %v228 = vld [vmem:[%s4 + $0x214] sm:$0xff]
  %v229 = vld [vmem:[%s4 + $0x230] sm:$0xff]
  %v230 = vld [vmem:[%s4 + $0x24c] sm:$0xff]
  %v231 = vld [vmem:[%s4 + $0x268] sm:$0xff]
  %v232 = vld [vmem:[%s4 + $0x284] sm:$0xff]
  %v233 = vld [vmem:[%s4 + $0x2a0] sm:$0xff]
  %v234 = vld [vmem:[%s4 + $0x2bc] sm:$0xff]
  %v235 = vld [vmem:[%s4 + $0x2d8] sm:$0xff]
  %v236 = vld [vmem:[%s4 + $0x2f4] sm:$0xff]
  %v237 = vld [vmem:[%s4 + $0x310] sm:$0xff]
  %v238 = vld [vmem:[%s4 + $0x32c] sm:$0xff]
  %v239 = vld [vmem:[%s4 + $0x348] sm:$0xff]
  %v240 = vld [vmem:[%s4 + $0x364] sm:$0xff]
  %v241 = vld [vmem:[%s4 + $0x8] sm:$0xff]
  %v242 = vld [vmem:[%s4 + $0x24] sm:$0xff]
  %v243 = vld [vmem:[%s4 + $0x40] sm:$0xff]
  %v244 = vld [vmem:[%s4 + $0x5c] sm:$0xff]
  %v245 = vld [vmem:[%s4 + $0x78] sm:$0xff]
  %v246 = vld [vmem:[%s4 + $0x94] sm:$0xff]
  %v247 = vld [vmem:[%s4 + $0xb0] sm:$0xff]
  %v248 = vld [vmem:[%s4 + $0xcc] sm:$0xff]
  %v249 = vld [vmem:[%s4 + $0xe8] sm:$0xff]
  %v250 = vld [vmem:[%s4 + $0x104] sm:$0xff]
  %v251 = vld [vmem:[%s4 + $0x120] sm:$0xff]
  %v252 = vld [vmem:[%s4 + $0x13c] sm:$0xff]
  %v253 = vld [vmem:[%s4 + $0x158] sm:$0xff]
  %v254 = vld [vmem:[%s4 + $0x174] sm:$0xff]
  %v255 = vld [vmem:[%s4 + $0x190] sm:$0xff]
  %v256 = vld [vmem:[%s4 + $0x1ac] sm:$0xff]
  %v257 = vld [vmem:[%s4 + $0x1c8] sm:$0xff]
  %v258 = vld [vmem:[%s4 + $0x1e4] sm:$0xff]
  %v259 = vld [vmem:[%s4 + $0x200] sm:$0xff]
  %v260 = vld [vmem:[%s4 + $0x21c] sm:$0xff]
  %v261 = vld [vmem:[%s4 + $0x238] sm:$0xff]
  %v262 = vld [vmem:[%s4 + $0x254] sm:$0xff]
  %v263 = vld [vmem:[%s4 + $0x270] sm:$0xff]
  %v264 = vld [vmem:[%s4 + $0x28c] sm:$0xff]
  %v265 = vld [vmem:[%s4 + $0x2a8] sm:$0xff]
  %v266 = vld [vmem:[%s4 + $0x2c4] sm:$0xff]
  %v267 = vld [vmem:[%s4 + $0x2e0] sm:$0xff]
  %v268 = vld [vmem:[%s4 + $0x2fc] sm:$0xff]
  %v269 = vld [vmem:[%s4 + $0x318] sm:$0xff]
  %v270 = vld [vmem:[%s4 + $0x334] sm:$0xff]
  %v271 = vld [vmem:[%s4 + $0x350] sm:$0xff]
  %v272 = vld [vmem:[%s4 + $0x36c] sm:$0xff]
  %s273 = scalar_lea.vmem %s5, 1
  %v274 = vld [vmem:[%s273] ss:$4 sm:$0x3]
  %v276 = vperm.slane %v274, 0
  %v277 = vperm.slane %v274, 1
  %v281 = vunpack.c.l.b16 %v207
  %v282 = vunpack.c.h.b16 %v207
  %v283 = vpack.c.b16 %v281, %v281
  %v284 = vpack.c.b16 %v282, %v282
  %v319 = vunpack.c.l.b16 %v209
  %v320 = vunpack.c.h.b16 %v209
  %v321 = vunpack.c.l.b16 %v210
  %v322 = vunpack.c.h.b16 %v210
  %v323 = vunpack.c.l.b16 %v211
  %v324 = vunpack.c.h.b16 %v211
  %v325 = vunpack.c.l.b16 %v212
  %v326 = vunpack.c.h.b16 %v212
  %v327 = vunpack.c.l.b16 %v213
  %v328 = vunpack.c.h.b16 %v213
  %v329 = vunpack.c.l.b16 %v214
  %v330 = vunpack.c.h.b16 %v214
  %v331 = vunpack.c.l.b16 %v215
  %v332 = vunpack.c.h.b16 %v215
  %v333 = vunpack.c.l.b16 %v216
  %v334 = vunpack.c.h.b16 %v216
  %v335 = vunpack.c.l.b16 %v217
  %v336 = vunpack.c.h.b16 %v217
  %v337 = vunpack.c.l.b16 %v218
  %v338 = vunpack.c.h.b16 %v218
  %v339 = vunpack.c.l.b16 %v219
  %v340 = vunpack.c.h.b16 %v219
  %v341 = vunpack.c.l.b16 %v220
  %v342 = vunpack.c.h.b16 %v220
  %v343 = vunpack.c.l.b16 %v221
  %v344 = vunpack.c.h.b16 %v221
  %v345 = vunpack.c.l.b16 %v222
  %v346 = vunpack.c.h.b16 %v222
  %v347 = vunpack.c.l.b16 %v223
  %v348 = vunpack.c.h.b16 %v223
  %v349 = vunpack.c.l.b16 %v224
  %v350 = vunpack.c.h.b16 %v224
  %v351 = vunpack.c.l.b16 %v225
  %v352 = vunpack.c.h.b16 %v225
  %v353 = vunpack.c.l.b16 %v226
  %v354 = vunpack.c.h.b16 %v226
  %v355 = vunpack.c.l.b16 %v227
  %v356 = vunpack.c.h.b16 %v227
  %v357 = vunpack.c.l.b16 %v228
  %v358 = vunpack.c.h.b16 %v228
  %v359 = vunpack.c.l.b16 %v229
  %v360 = vunpack.c.h.b16 %v229
  %v361 = vunpack.c.l.b16 %v230
  %v362 = vunpack.c.h.b16 %v230
  %v363 = vunpack.c.l.b16 %v231
  %v364 = vunpack.c.h.b16 %v231
  %v365 = vunpack.c.l.b16 %v232
  %v366 = vunpack.c.h.b16 %v232
  %v367 = vunpack.c.l.b16 %v233
  %v368 = vunpack.c.h.b16 %v233
  %v369 = vunpack.c.l.b16 %v234
  %v370 = vunpack.c.h.b16 %v234
  %v371 = vunpack.c.l.b16 %v235
  %v372 = vunpack.c.h.b16 %v235
  %v373 = vunpack.c.l.b16 %v236
  %v374 = vunpack.c.h.b16 %v236
  %v375 = vunpack.c.l.b16 %v237
  %v376 = vunpack.c.h.b16 %v237
  %v377 = vunpack.c.l.b16 %v238
  %v378 = vunpack.c.h.b16 %v238
  %v379 = vunpack.c.l.b16 %v239
  %v380 = vunpack.c.h.b16 %v239
  %v381 = vunpack.c.l.b16 %v240
  %v382 = vunpack.c.h.b16 %v240
  %v383 = vpack.c.b16 %v321, %v319
  %v384 = vpack.c.b16 %v322, %v320
  %v385 = vpack.c.b16 %v325, %v323
  %v386 = vpack.c.b16 %v326, %v324
  %v387 = vpack.c.b16 %v329, %v327
  %v388 = vpack.c.b16 %v330, %v328
  %v389 = vpack.c.b16 %v333, %v331
  %v390 = vpack.c.b16 %v334, %v332
  %v391 = vpack.c.b16 %v337, %v335
  %v392 = vpack.c.b16 %v338, %v336
  %v393 = vpack.c.b16 %v341, %v339
  %v394 = vpack.c.b16 %v342, %v340
  %v395 = vpack.c.b16 %v345, %v343
  %v396 = vpack.c.b16 %v346, %v344
  %v397 = vpack.c.b16 %v349, %v347
  %v398 = vpack.c.b16 %v350, %v348
  %v399 = vpack.c.b16 %v353, %v351
  %v400 = vpack.c.b16 %v354, %v352
  %v401 = vpack.c.b16 %v357, %v355
  %v402 = vpack.c.b16 %v358, %v356
  %v403 = vpack.c.b16 %v361, %v359
  %v404 = vpack.c.b16 %v362, %v360
  %v405 = vpack.c.b16 %v365, %v363
  %v406 = vpack.c.b16 %v366, %v364
  %v407 = vpack.c.b16 %v369, %v367
  %v408 = vpack.c.b16 %v370, %v368
  %v409 = vpack.c.b16 %v373, %v371
  %v410 = vpack.c.b16 %v374, %v372
  %v411 = vpack.c.b16 %v377, %v375
  %v412 = vpack.c.b16 %v378, %v376
  %v413 = vpack.c.b16 %v381, %v379
  %v414 = vpack.c.b16 %v382, %v380
  %447 = vmatpush.bf16.msra.mxu0 %v397
  %448 = vmatpush.bf16.msra.mxu0 %v395
  %449 = vmatpush.bf16.msra.mxu0 %v393
  %450 = vmatpush.bf16.msra.mxu0 %v391
  %451 = vmatpush.bf16.msra.mxu0 %v389
  %452 = vmatpush.bf16.msra.mxu0 %v387
  %453 = vmatpush.bf16.msra.mxu0 %v385
  %454 = vmatpush.bf16.msra.mxu0 %v383
  %455 = vmatmul.bf16.gmra.mxu0 %v283
  %v456 = vpop.f32.mrf.mxu0
  %v457 = vadd.f32 %v276, %v456
  %v458 = vpop.f32.mrf.mxu0
  %459 = vdwg.mxu0
  %460 = vmatpush.bf16.msra.mxu0 %v413
  %461 = vmatpush.bf16.msra.mxu0 %v411
  %462 = vmatpush.bf16.msra.mxu0 %v409
  %463 = vmatpush.bf16.msra.mxu0 %v407
  %464 = vmatpush.bf16.msra.mxu0 %v405
  %465 = vmatpush.bf16.msra.mxu0 %v403
  %466 = vmatpush.bf16.msra.mxu0 %v401
  %467 = vmatpush.bf16.msra.mxu0 %v399
  %468 = vmatmul.bf16.gmra.mxu0 %v284
  %v469 = vpop.f32.mrf.mxu0
  %v470 = vadd.f32 %v457, %v469
  %v471 = vpop.f32.mrf.mxu0
  %472 = vdwg.mxu0
  %473 = vmatpush.bf16.msra.mxu0 %v398
  %474 = vmatpush.bf16.msra.mxu0 %v396
  %475 = vmatpush.bf16.msra.mxu0 %v394
  %476 = vmatpush.bf16.msra.mxu0 %v392
  %477 = vmatpush.bf16.msra.mxu0 %v390
  %478 = vmatpush.bf16.msra.mxu0 %v388
  %479 = vmatpush.bf16.msra.mxu0 %v386
  %480 = vmatpush.bf16.msra.mxu0 %v384
  %481 = vmatmul.bf16.gmra.mxu0 %v283
  %v482 = vpop.f32.mrf.mxu0
  %v483 = vadd.f32 %v277, %v482
  %v484 = vpop.f32.mrf.mxu0
  %485 = vdwg.mxu0
  %486 = vmatpush.bf16.msra.mxu0 %v414
  %487 = vmatpush.bf16.msra.mxu0 %v412
  %488 = vmatpush.bf16.msra.mxu0 %v410
  %489 = vmatpush.bf16.msra.mxu0 %v408
  %490 = vmatpush.bf16.msra.mxu0 %v406
  %491 = vmatpush.bf16.msra.mxu0 %v404
  %492 = vmatpush.bf16.msra.mxu0 %v402
  %493 = vmatpush.bf16.msra.mxu0 %v400
  %494 = vmatmul.bf16.gmra.mxu0 %v284
  %v495 = vpop.f32.mrf.mxu0
  %v496 = vadd.f32 %v483, %v495
  %v497 = vpop.f32.mrf.mxu0
  %498 = vdwg.mxu0
  %v499 = vmax.f32 %v470, 0.0
  %v500 = vmax.f32 %v496, 0.0
  %v501 = vpack.c.bf16 %v499, %v499
  %v502 = vpack.c.bf16 %v500, %v500
  %s503 = scalar_lea.vmem %s5, 9
  %v504 = vld [vmem:[%s503] ss:$4 sm:$0x3]
  %v506 = vperm.slane %v504, 0
  %v507 = vperm.slane %v504, 1
  %v511 = vunpack.c.l.b16 %v208
  %v512 = vunpack.c.h.b16 %v208
  %v513 = vpack.c.b16 %v511, %v511
  %v514 = vpack.c.b16 %v512, %v512
  %v549 = vunpack.c.l.b16 %v241
  %v550 = vunpack.c.h.b16 %v241
  %v551 = vunpack.c.l.b16 %v242
  %v552 = vunpack.c.h.b16 %v242
  %v553 = vunpack.c.l.b16 %v243
  %v554 = vunpack.c.h.b16 %v243
  %v555 = vunpack.c.l.b16 %v244
  %v556 = vunpack.c.h.b16 %v244
  %v557 = vunpack.c.l.b16 %v245
  %v558 = vunpack.c.h.b16 %v245
  %v559 = vunpack.c.l.b16 %v246
  %v560 = vunpack.c.h.b16 %v246
  %v561 = vunpack.c.l.b16 %v247
  %v562 = vunpack.c.h.b16 %v247
  %v563 = vunpack.c.l.b16 %v248
  %v564 = vunpack.c.h.b16 %v248
  %v565 = vunpack.c.l.b16 %v249
  %v566 = vunpack.c.h.b16 %v249
  %v567 = vunpack.c.l.b16 %v250
  %v568 = vunpack.c.h.b16 %v250
  %v569 = vunpack.c.l.b16 %v251
  %v570 = vunpack.c.h.b16 %v251
  %v571 = vunpack.c.l.b16 %v252
  %v572 = vunpack.c.h.b16 %v252
  %v573 = vunpack.c.l.b16 %v253
  %v574 = vunpack.c.h.b16 %v253
  %v575 = vunpack.c.l.b16 %v254
  %v576 = vunpack.c.h.b16 %v254
  %v577 = vunpack.c.l.b16 %v255
  %v578 = vunpack.c.h.b16 %v255
  %v579 = vunpack.c.l.b16 %v256
  %v580 = vunpack.c.h.b16 %v256
  %v581 = vunpack.c.l.b16 %v257
  %v582 = vunpack.c.h.b16 %v257
  %v583 = vunpack.c.l.b16 %v258
  %v584 = vunpack.c.h.b16 %v258
  %v585 = vunpack.c.l.b16 %v259
  %v586 = vunpack.c.h.b16 %v259
  %v587 = vunpack.c.l.b16 %v260
  %v588 = vunpack.c.h.b16 %v260
  %v589 = vunpack.c.l.b16 %v261
  %v590 = vunpack.c.h.b16 %v261
  %v591 = vunpack.c.l.b16 %v262
  %v592 = vunpack.c.h.b16 %v262
  %v593 = vunpack.c.l.b16 %v263
  %v594 = vunpack.c.h.b16 %v263
  %v595 = vunpack.c.l.b16 %v264
  %v596 = vunpack.c.h.b16 %v264
  %v597 = vunpack.c.l.b16 %v265
  %v598 = vunpack.c.h.b16 %v265
  %v599 = vunpack.c.l.b16 %v266
  %v600 = vunpack.c.h.b16 %v266
  %v601 = vunpack.c.l.b16 %v267
  %v602 = vunpack.c.h.b16 %v267
  %v603 = vunpack.c.l.b16 %v268
  %v604 = vunpack.c.h.b16 %v268
  %v605 = vunpack.c.l.b16 %v269
  %v606 = vunpack.c.h.b16 %v269
  %v607 = vunpack.c.l.b16 %v270
  %v608 = vunpack.c.h.b16 %v270
  %v609 = vunpack.c.l.b16 %v271
  %v610 = vunpack.c.h.b16 %v271
  %v611 = vunpack.c.l.b16 %v272
  %v612 = vunpack.c.h.b16 %v272
  %v613 = vpack.c.b16 %v551, %v549
  %v614 = vpack.c.b16 %v552, %v550
  %v615 = vpack.c.b16 %v555, %v553
  %v616 = vpack.c.b16 %v556, %v554
  %v617 = vpack.c.b16 %v559, %v557
  %v618 = vpack.c.b16 %v560, %v558
  %v619 = vpack.c.b16 %v563, %v561
  %v620 = vpack.c.b16 %v564, %v562
  %v621 = vpack.c.b16 %v567, %v565
  %v622 = vpack.c.b16 %v568, %v566
  %v623 = vpack.c.b16 %v571, %v569
  %v624 = vpack.c.b16 %v572, %v570
  %v625 = vpack.c.b16 %v575, %v573
  %v626 = vpack.c.b16 %v576, %v574
  %v627 = vpack.c.b16 %v579, %v577
  %v628 = vpack.c.b16 %v580, %v578
  %v629 = vpack.c.b16 %v583, %v581
  %v630 = vpack.c.b16 %v584, %v582
  %v631 = vpack.c.b16 %v587, %v585
  %v632 = vpack.c.b16 %v588, %v586
  %v633 = vpack.c.b16 %v591, %v589
  %v634 = vpack.c.b16 %v592, %v590
  %v635 = vpack.c.b16 %v595, %v593
  %v636 = vpack.c.b16 %v596, %v594
  %v637 = vpack.c.b16 %v599, %v597
  %v638 = vpack.c.b16 %v600, %v598
  %v639 = vpack.c.b16 %v603, %v601
  %v640 = vpack.c.b16 %v604, %v602
  %v641 = vpack.c.b16 %v607, %v605
  %v642 = vpack.c.b16 %v608, %v606
  %v643 = vpack.c.b16 %v611, %v609
  %v644 = vpack.c.b16 %v612, %v610
  %677 = vmatpush.bf16.msra.mxu0 %v627
  %678 = vmatpush.bf16.msra.mxu0 %v625
  %679 = vmatpush.bf16.msra.mxu0 %v623
  %680 = vmatpush.bf16.msra.mxu0 %v621
  %681 = vmatpush.bf16.msra.mxu0 %v619
  %682 = vmatpush.bf16.msra.mxu0 %v617
  %683 = vmatpush.bf16.msra.mxu0 %v615
  %684 = vmatpush.bf16.msra.mxu0 %v613
  %685 = vmatmul.bf16.gmra.mxu0 %v513
  %v686 = vpop.f32.mrf.mxu0
  %v687 = vadd.f32 %v506, %v686
  %v688 = vpop.f32.mrf.mxu0
  %689 = vdwg.mxu0
  %690 = vmatpush.bf16.msra.mxu0 %v643
  %691 = vmatpush.bf16.msra.mxu0 %v641
  %692 = vmatpush.bf16.msra.mxu0 %v639
  %693 = vmatpush.bf16.msra.mxu0 %v637
  %694 = vmatpush.bf16.msra.mxu0 %v635
  %695 = vmatpush.bf16.msra.mxu0 %v633
  %696 = vmatpush.bf16.msra.mxu0 %v631
  %697 = vmatpush.bf16.msra.mxu0 %v629
  %698 = vmatmul.bf16.gmra.mxu0 %v514
  %v699 = vpop.f32.mrf.mxu0
  %v700 = vadd.f32 %v687, %v699
  %v701 = vpop.f32.mrf.mxu0
  %702 = vdwg.mxu0
  %703 = vmatpush.bf16.msra.mxu0 %v628
  %704 = vmatpush.bf16.msra.mxu0 %v626
  %705 = vmatpush.bf16.msra.mxu0 %v624
  %706 = vmatpush.bf16.msra.mxu0 %v622
  %707 = vmatpush.bf16.msra.mxu0 %v620
  %708 = vmatpush.bf16.msra.mxu0 %v618
  %709 = vmatpush.bf16.msra.mxu0 %v616
  %710 = vmatpush.bf16.msra.mxu0 %v614
  %711 = vmatmul.bf16.gmra.mxu0 %v513
  %v712 = vpop.f32.mrf.mxu0
  %v713 = vadd.f32 %v507, %v712
  %v714 = vpop.f32.mrf.mxu0
  %715 = vdwg.mxu0
  %716 = vmatpush.bf16.msra.mxu0 %v644
  %717 = vmatpush.bf16.msra.mxu0 %v642
  %718 = vmatpush.bf16.msra.mxu0 %v640
  %719 = vmatpush.bf16.msra.mxu0 %v638
  %720 = vmatpush.bf16.msra.mxu0 %v636
  %721 = vmatpush.bf16.msra.mxu0 %v634
  %722 = vmatpush.bf16.msra.mxu0 %v632
  %723 = vmatpush.bf16.msra.mxu0 %v630
  %724 = vmatmul.bf16.gmra.mxu0 %v514
  %v725 = vpop.f32.mrf.mxu0
  %v726 = vadd.f32 %v713, %v725
  %v727 = vpop.f32.mrf.mxu0
  %728 = vdwg.mxu0
  %v729 = vmax.f32 %v700, 0.0
  %v730 = vmax.f32 %v726, 0.0
  %v731 = vpack.c.bf16 %v729, %v729
  %v732 = vpack.c.bf16 %v730, %v730
  %v733 = vld [vmem:[%s4 + $0x10] sm:$0xf]
  %v734 = vld [vmem:[%s4 + $0x2c] sm:$0xf]
  %v735 = vld [vmem:[%s4 + $0x48] sm:$0xf]
  %v736 = vld [vmem:[%s4 + $0x64] sm:$0xf]
  %v737 = vld [vmem:[%s4 + $0x80] sm:$0xf]
  %v738 = vld [vmem:[%s4 + $0x9c] sm:$0xf]
  %v739 = vld [vmem:[%s4 + $0xb8] sm:$0xf]
  %v740 = vld [vmem:[%s4 + $0xd4] sm:$0xf]
  %v741 = vld [vmem:[%s4 + $0xf0] sm:$0xf]
  %v742 = vld [vmem:[%s4 + $0x10c] sm:$0xf]
  %v743 = vld [vmem:[%s4 + $0x128] sm:$0xf]
  %v744 = vld [vmem:[%s4 + $0x144] sm:$0xf]
  %v745 = vld [vmem:[%s4 + $0x160] sm:$0xf]
  %v746 = vld [vmem:[%s4 + $0x17c] sm:$0xf]
  %v747 = vld [vmem:[%s4 + $0x198] sm:$0xf]
  %v748 = vld [vmem:[%s4 + $0x1b4] sm:$0xf]
  %v749 = vld [vmem:[%s4 + $0x1d0] sm:$0xf]
  %v750 = vld [vmem:[%s4 + $0x1ec] sm:$0xf]
  %v751 = vld [vmem:[%s4 + $0x208] sm:$0xf]
  %v752 = vld [vmem:[%s4 + $0x224] sm:$0xf]
  %v753 = vld [vmem:[%s4 + $0x240] sm:$0xf]
  %v754 = vld [vmem:[%s4 + $0x25c] sm:$0xf]
  %v755 = vld [vmem:[%s4 + $0x278] sm:$0xf]
  %v756 = vld [vmem:[%s4 + $0x294] sm:$0xf]
  %v757 = vld [vmem:[%s4 + $0x2b0] sm:$0xf]
  %v758 = vld [vmem:[%s4 + $0x2cc] sm:$0xf]
  %v759 = vld [vmem:[%s4 + $0x2e8] sm:$0xf]
  %v760 = vld [vmem:[%s4 + $0x304] sm:$0xf]
  %v761 = vld [vmem:[%s4 + $0x320] sm:$0xf]
  %v762 = vld [vmem:[%s4 + $0x33c] sm:$0xf]
  %v763 = vld [vmem:[%s4 + $0x358] sm:$0xf]
  %v764 = vld [vmem:[%s4 + $0x374] sm:$0xf]
  %v765 = vld [vmem:[%s4 + $0x14] sm:$0xf]
  %v766 = vld [vmem:[%s4 + $0x30] sm:$0xf]
  %v767 = vld [vmem:[%s4 + $0x4c] sm:$0xf]
  %v768 = vld [vmem:[%s4 + $0x68] sm:$0xf]
  %v769 = vld [vmem:[%s4 + $0x84] sm:$0xf]
  %v770 = vld [vmem:[%s4 + $0xa0] sm:$0xf]
  %v771 = vld [vmem:[%s4 + $0xbc] sm:$0xf]
  %v772 = vld [vmem:[%s4 + $0xd8] sm:$0xf]
  %v773 = vld [vmem:[%s4 + $0xf4] sm:$0xf]
  %v774 = vld [vmem:[%s4 + $0x110] sm:$0xf]
  %v775 = vld [vmem:[%s4 + $0x12c] sm:$0xf]
  %v776 = vld [vmem:[%s4 + $0x148] sm:$0xf]
  %v777 = vld [vmem:[%s4 + $0x164] sm:$0xf]
  %v778 = vld [vmem:[%s4 + $0x180] sm:$0xf]
  %v779 = vld [vmem:[%s4 + $0x19c] sm:$0xf]
  %v780 = vld [vmem:[%s4 + $0x1b8] sm:$0xf]
  %v781 = vld [vmem:[%s4 + $0x1d4] sm:$0xf]
  %v782 = vld [vmem:[%s4 + $0x1f0] sm:$0xf]
  %v783 = vld [vmem:[%s4 + $0x20c] sm:$0xf]
  %v784 = vld [vmem:[%s4 + $0x228] sm:$0xf]
  %v785 = vld [vmem:[%s4 + $0x244] sm:$0xf]
  %v786 = vld [vmem:[%s4 + $0x260] sm:$0xf]
  %v787 = vld [vmem:[%s4 + $0x27c] sm:$0xf]
  %v788 = vld [vmem:[%s4 + $0x298] sm:$0xf]
  %v789 = vld [vmem:[%s4 + $0x2b4] sm:$0xf]
  %v790 = vld [vmem:[%s4 + $0x2d0] sm:$0xf]
  %v791 = vld [vmem:[%s4 + $0x2ec] sm:$0xf]
  %v792 = vld [vmem:[%s4 + $0x308] sm:$0xf]
  %v793 = vld [vmem:[%s4 + $0x324] sm:$0xf]
  %v794 = vld [vmem:[%s4 + $0x340] sm:$0xf]
  %v795 = vld [vmem:[%s4 + $0x35c] sm:$0xf]
  %v796 = vld [vmem:[%s4 + $0x378] sm:$0xf]
  %v797 = vld [vmem:[%s5 + $0x2] sm:$0x1]
  %v798 = vperm.slane %v797, 0
  %v831 = vunpack.c.l.b16 %v733
  %v832 = vunpack.c.l.b16 %v734
  %v833 = vunpack.c.l.b16 %v735
  %v834 = vunpack.c.l.b16 %v736
  %v835 = vunpack.c.l.b16 %v737
  %v836 = vunpack.c.l.b16 %v738
  %v837 = vunpack.c.l.b16 %v739
  %v838 = vunpack.c.l.b16 %v740
  %v839 = vunpack.c.l.b16 %v741
  %v840 = vunpack.c.l.b16 %v742
  %v841 = vunpack.c.l.b16 %v743
  %v842 = vunpack.c.l.b16 %v744
  %v843 = vunpack.c.l.b16 %v745
  %v844 = vunpack.c.l.b16 %v746
  %v845 = vunpack.c.l.b16 %v747
  %v846 = vunpack.c.l.b16 %v748
  %v847 = vunpack.c.l.b16 %v749
  %v848 = vunpack.c.l.b16 %v750
  %v849 = vunpack.c.l.b16 %v751
  %v850 = vunpack.c.l.b16 %v752
  %v851 = vunpack.c.l.b16 %v753
  %v852 = vunpack.c.l.b16 %v754
  %v853 = vunpack.c.l.b16 %v755
  %v854 = vunpack.c.l.b16 %v756
  %v855 = vunpack.c.l.b16 %v757
  %v856 = vunpack.c.l.b16 %v758
  %v857 = vunpack.c.l.b16 %v759
  %v858 = vunpack.c.l.b16 %v760
  %v859 = vunpack.c.l.b16 %v761
  %v860 = vunpack.c.l.b16 %v762
  %v861 = vunpack.c.l.b16 %v763
  %v862 = vunpack.c.l.b16 %v764
  %v863 = vpack.c.b16 %v832, %v831
  %v864 = vpack.c.b16 %v834, %v833
  %v865 = vpack.c.b16 %v836, %v835
  %v866 = vpack.c.b16 %v838, %v837
  %v867 = vpack.c.b16 %v840, %v839
  %v868 = vpack.c.b16 %v842, %v841
  %v869 = vpack.c.b16 %v844, %v843
  %v870 = vpack.c.b16 %v846, %v845
  %v871 = vpack.c.b16 %v848, %v847
  %v872 = vpack.c.b16 %v850, %v849
  %v873 = vpack.c.b16 %v852, %v851
  %v874 = vpack.c.b16 %v854, %v853
  %v875 = vpack.c.b16 %v856, %v855
  %v876 = vpack.c.b16 %v858, %v857
  %v877 = vpack.c.b16 %v860, %v859
  %v878 = vpack.c.b16 %v862, %v861
  %895 = vmatpush.bf16.msra.mxu0 %v870
  %896 = vmatpush.bf16.msra.mxu0 %v869
  %897 = vmatpush.bf16.msra.mxu0 %v868
  %898 = vmatpush.bf16.msra.mxu0 %v867
  %899 = vmatpush.bf16.msra.mxu0 %v866
  %900 = vmatpush.bf16.msra.mxu0 %v865
  %901 = vmatpush.bf16.msra.mxu0 %v864
  %902 = vmatpush.bf16.msra.mxu0 %v863
  %903 = vmatmul.bf16.gmra.mxu0 %v501
  %v904 = vpop.f32.mrf.mxu0
  %v905 = vadd.f32 %v798, %v904
  %v906 = vpop.f32.mrf.mxu0
  %907 = vdwg.mxu0
  %908 = vmatpush.bf16.msra.mxu0 %v878
  %909 = vmatpush.bf16.msra.mxu0 %v877
  %910 = vmatpush.bf16.msra.mxu0 %v876
  %911 = vmatpush.bf16.msra.mxu0 %v875
  %912 = vmatpush.bf16.msra.mxu0 %v874
  %913 = vmatpush.bf16.msra.mxu0 %v873
  %914 = vmatpush.bf16.msra.mxu0 %v872
  %915 = vmatpush.bf16.msra.mxu0 %v871
  %916 = vmatmul.bf16.gmra.mxu0 %v502
  %v917 = vpop.f32.mrf.mxu0
  %v918 = vadd.f32 %v905, %v917
  %v919 = vpop.f32.mrf.mxu0
  %920 = vdwg.mxu0
  %v921 = vmax.f32 %v918, 0.0
  %v922 = vpack.c.bf16 %v921, %v921
  %v923 = vld [vmem:[%s5 + $0x6] sm:$0x1]
  %v924 = vperm.slane %v923, 0
  %v957 = vunpack.c.l.b16 %v765
  %v958 = vunpack.c.l.b16 %v766
  %v959 = vunpack.c.l.b16 %v767
  %v960 = vunpack.c.l.b16 %v768
  %v961 = vunpack.c.l.b16 %v769
  %v962 = vunpack.c.l.b16 %v770
  %v963 = vunpack.c.l.b16 %v771
  %v964 = vunpack.c.l.b16 %v772
  %v965 = vunpack.c.l.b16 %v773
  %v966 = vunpack.c.l.b16 %v774
  %v967 = vunpack.c.l.b16 %v775
  %v968 = vunpack.c.l.b16 %v776
  %v969 = vunpack.c.l.b16 %v777
  %v970 = vunpack.c.l.b16 %v778
  %v971 = vunpack.c.l.b16 %v779
  %v972 = vunpack.c.l.b16 %v780
  %v973 = vunpack.c.l.b16 %v781
  %v974 = vunpack.c.l.b16 %v782
  %v975 = vunpack.c.l.b16 %v783
  %v976 = vunpack.c.l.b16 %v784
  %v977 = vunpack.c.l.b16 %v785
  %v978 = vunpack.c.l.b16 %v786
  %v979 = vunpack.c.l.b16 %v787
  %v980 = vunpack.c.l.b16 %v788
  %v981 = vunpack.c.l.b16 %v789
  %v982 = vunpack.c.l.b16 %v790
  %v983 = vunpack.c.l.b16 %v791
  %v984 = vunpack.c.l.b16 %v792
  %v985 = vunpack.c.l.b16 %v793
  %v986 = vunpack.c.l.b16 %v794
  %v987 = vunpack.c.l.b16 %v795
  %v988 = vunpack.c.l.b16 %v796
  %v989 = vpack.c.b16 %v958, %v957
  %v990 = vpack.c.b16 %v960, %v959
  %v991 = vpack.c.b16 %v962, %v961
  %v992 = vpack.c.b16 %v964, %v963
  %v993 = vpack.c.b16 %v966, %v965
  %v994 = vpack.c.b16 %v968, %v967
  %v995 = vpack.c.b16 %v970, %v969
  %v996 = vpack.c.b16 %v972, %v971
  %v997 = vpack.c.b16 %v974, %v973
  %v998 = vpack.c.b16 %v976, %v975
  %v999 = vpack.c.b16 %v978, %v977
  %v1000 = vpack.c.b16 %v980, %v979
  %v1001 = vpack.c.b16 %v982, %v981
  %v1002 = vpack.c.b16 %v984, %v983
  %v1003 = vpack.c.b16 %v986, %v985
  %v1004 = vpack.c.b16 %v988, %v987
  %1021 = vmatpush.bf16.msra.mxu0 %v996
  %1022 = vmatpush.bf16.msra.mxu0 %v995
  %1023 = vmatpush.bf16.msra.mxu0 %v994
  %1024 = vmatpush.bf16.msra.mxu0 %v993
  %1025 = vmatpush.bf16.msra.mxu0 %v992
  %1026 = vmatpush.bf16.msra.mxu0 %v991
  %1027 = vmatpush.bf16.msra.mxu0 %v990
  %1028 = vmatpush.bf16.msra.mxu0 %v989
  %1029 = vmatmul.bf16.gmra.mxu0 %v731
  %v1030 = vpop.f32.mrf.mxu0
  %v1031 = vadd.f32 %v924, %v1030
  %v1032 = vpop.f32.mrf.mxu0
  %1033 = vdwg.mxu0
  %1034 = vmatpush.bf16.msra.mxu0 %v1004
  %1035 = vmatpush.bf16.msra.mxu0 %v1003
  %1036 = vmatpush.bf16.msra.mxu0 %v1002
  %1037 = vmatpush.bf16.msra.mxu0 %v1001
  %1038 = vmatpush.bf16.msra.mxu0 %v1000
  %1039 = vmatpush.bf16.msra.mxu0 %v999
  %1040 = vmatpush.bf16.msra.mxu0 %v998
  %1041 = vmatpush.bf16.msra.mxu0 %v997
  %1042 = vmatmul.bf16.gmra.mxu0 %v732
  %v1043 = vpop.f32.mrf.mxu0
  %v1044 = vadd.f32 %v1031, %v1043
  %v1045 = vpop.f32.mrf.mxu0
  %1046 = vdwg.mxu0
  %v1047 = vmax.f32 %v1044, 0.0
  %v1048 = vpack.c.bf16 %v1047, %v1047
  %v1049 = vld [vmem:[%s4 + $0x18] sm:$0xf]
  %v1050 = vld [vmem:[%s4 + $0x34] sm:$0xf]
  %v1051 = vld [vmem:[%s4 + $0x50] sm:$0xf]
  %v1052 = vld [vmem:[%s4 + $0x6c] sm:$0xf]
  %v1053 = vld [vmem:[%s4 + $0x88] sm:$0xf]
  %v1054 = vld [vmem:[%s4 + $0xa4] sm:$0xf]
  %v1055 = vld [vmem:[%s4 + $0xc0] sm:$0xf]
  %v1056 = vld [vmem:[%s4 + $0xdc] sm:$0xf]
  %v1057 = vld [vmem:[%s4 + $0xf8] sm:$0xf]
  %v1058 = vld [vmem:[%s4 + $0x114] sm:$0xf]
  %v1059 = vld [vmem:[%s4 + $0x130] sm:$0xf]
  %v1060 = vld [vmem:[%s4 + $0x14c] sm:$0xf]
  %v1061 = vld [vmem:[%s4 + $0x168] sm:$0xf]
  %v1062 = vld [vmem:[%s4 + $0x184] sm:$0xf]
  %v1063 = vld [vmem:[%s4 + $0x1a0] sm:$0xf]
  %v1064 = vld [vmem:[%s4 + $0x1bc] sm:$0xf]
  %v1065 = vld [vmem:[%s4 + $0x1d8] sm:$0xf]
  %v1066 = vld [vmem:[%s4 + $0x1f4] sm:$0xf]
  %v1067 = vld [vmem:[%s4 + $0x210] sm:$0xf]
  %v1068 = vld [vmem:[%s4 + $0x22c] sm:$0xf]
  %v1069 = vld [vmem:[%s4 + $0x248] sm:$0xf]
  %v1070 = vld [vmem:[%s4 + $0x264] sm:$0xf]
  %v1071 = vld [vmem:[%s4 + $0x280] sm:$0xf]
  %v1072 = vld [vmem:[%s4 + $0x29c] sm:$0xf]
  %v1073 = vld [vmem:[%s4 + $0x2b8] sm:$0xf]
  %v1074 = vld [vmem:[%s4 + $0x2d4] sm:$0xf]
  %v1075 = vld [vmem:[%s4 + $0x2f0] sm:$0xf]
  %v1076 = vld [vmem:[%s4 + $0x30c] sm:$0xf]
  %v1077 = vld [vmem:[%s4 + $0x328] sm:$0xf]
  %v1078 = vld [vmem:[%s4 + $0x344] sm:$0xf]
  %v1079 = vld [vmem:[%s4 + $0x360] sm:$0xf]
  %v1080 = vld [vmem:[%s4 + $0x37c] sm:$0xf]
  %v1097 = vunpack.c.l.b16 %v1065
  %v1098 = vunpack.c.l.b16 %v1066
  %v1099 = vunpack.c.l.b16 %v1067
  %v1100 = vunpack.c.l.b16 %v1068
  %v1101 = vunpack.c.l.b16 %v1069
  %v1102 = vunpack.c.l.b16 %v1070
  %v1103 = vunpack.c.l.b16 %v1071
  %v1104 = vunpack.c.l.b16 %v1072
  %v1105 = vunpack.c.l.b16 %v1073
  %v1106 = vunpack.c.l.b16 %v1074
  %v1107 = vunpack.c.l.b16 %v1075
  %v1108 = vunpack.c.l.b16 %v1076
  %v1109 = vunpack.c.l.b16 %v1077
  %v1110 = vunpack.c.l.b16 %v1078
  %v1111 = vunpack.c.l.b16 %v1079
  %v1112 = vunpack.c.l.b16 %v1080
  %v1113 = vpack.c.b16 %v1098, %v1097
  %v1114 = vpack.c.b16 %v1100, %v1099
  %v1115 = vpack.c.b16 %v1102, %v1101
  %v1116 = vpack.c.b16 %v1104, %v1103
  %v1117 = vpack.c.b16 %v1106, %v1105
  %v1118 = vpack.c.b16 %v1108, %v1107
  %v1119 = vpack.c.b16 %v1110, %v1109
  %v1120 = vpack.c.b16 %v1112, %v1111
  %1129 = vmatpush.bf16.msra.mxu0 %v1120
  %1130 = vmatpush.bf16.msra.mxu0 %v1119
  %1131 = vmatpush.bf16.msra.mxu0 %v1118
  %1132 = vmatpush.bf16.msra.mxu0 %v1117
  %1133 = vmatpush.bf16.msra.mxu0 %v1116
  %1134 = vmatpush.bf16.msra.mxu0 %v1115
  %1135 = vmatpush.bf16.msra.mxu0 %v1114
  %1136 = vmatpush.bf16.msra.mxu0 %v1113
  %1137 = vmatmul.bf16.gmra.mxu0 %v1048
  %v1138 = vpop.f32.mrf.mxu0
  %v1139 = vadd.f32 0.0, %v1138
  %v1140 = vpop.f32.mrf.mxu0
  %1141 = vdwg.mxu0
  %v1158 = vunpack.c.l.b16 %v1049
  %v1159 = vunpack.c.l.b16 %v1050
  %v1160 = vunpack.c.l.b16 %v1051
  %v1161 = vunpack.c.l.b16 %v1052
  %v1162 = vunpack.c.l.b16 %v1053
  %v1163 = vunpack.c.l.b16 %v1054
  %v1164 = vunpack.c.l.b16 %v1055
  %v1165 = vunpack.c.l.b16 %v1056
  %v1166 = vunpack.c.l.b16 %v1057
  %v1167 = vunpack.c.l.b16 %v1058
  %v1168 = vunpack.c.l.b16 %v1059
  %v1169 = vunpack.c.l.b16 %v1060
  %v1170 = vunpack.c.l.b16 %v1061
  %v1171 = vunpack.c.l.b16 %v1062
  %v1172 = vunpack.c.l.b16 %v1063
  %v1173 = vunpack.c.l.b16 %v1064
  %v1174 = vpack.c.b16 %v1159, %v1158
  %v1175 = vpack.c.b16 %v1161, %v1160
  %v1176 = vpack.c.b16 %v1163, %v1162
  %v1177 = vpack.c.b16 %v1165, %v1164
  %v1178 = vpack.c.b16 %v1167, %v1166
  %v1179 = vpack.c.b16 %v1169, %v1168
  %v1180 = vpack.c.b16 %v1171, %v1170
  %v1181 = vpack.c.b16 %v1173, %v1172
  %1190 = vmatpush.bf16.msra.mxu0 %v1181
  %1191 = vmatpush.bf16.msra.mxu0 %v1180
  %1192 = vmatpush.bf16.msra.mxu0 %v1179
  %1193 = vmatpush.bf16.msra.mxu0 %v1178
  %1194 = vmatpush.bf16.msra.mxu0 %v1177
  %1195 = vmatpush.bf16.msra.mxu0 %v1176
  %1196 = vmatpush.bf16.msra.mxu0 %v1175
  %1197 = vmatpush.bf16.msra.mxu0 %v1174
  %1198 = vmatmul.bf16.gmra.mxu0 %v922
  %v1199 = vpop.f32.mrf.mxu0
  %v1200 = vadd.f32 %v1139, %v1199
  %v1201 = vpop.f32.mrf.mxu0
  %1202 = vdwg.mxu0
  %v1203 = vld [vmem:[%s5 + $0x3] sm:$0x1]
  %v1204 = vperm.slane %v1203, 0
  %v1205 = vadd.f32 %v1200, %v1204
  %vm1206 = vcmask 15360
  %1207 = vst.msk [vmem:[%s6] sm:$0xff] %vm1206, %v1205
  // Predicated region
  $region26: #{td3_critic_forward.1} parent=0 // pred_check
    _
  $region27: #{td3_critic_forward.1} parent=0 // pred_check_branch
    %1209 = sbr.rel (0) target = $region29
  $region28: #{td3_critic_forward.1} parent=0 // pred_region
    _
  $region29: #{td3_critic_forward.1} parent=0 // pred_fallthru
    _
  // Predicated region
  $region30: #{td3_critic_forward.1} parent=0 // pred_check
    _
  $region31: #{td3_critic_forward.1} parent=0 // pred_check_branch
    %1211 = sbr.rel (0) target = $region33
  $region32: #{td3_critic_forward.1} parent=0 // pred_region
    _
  $region33: #{td3_critic_forward.1} parent=0 // pred_fallthru
    _

</llo_original>
